<compile_context>
chip_gen: v7x
topology: tpu7x:2x2x1
jax: 0.10.0
libtpu: 0.0.40
codegen_flags: <defaults>
</compile_context>

<pallas_src>
import functools

import jax
import jax.numpy as jnp
from jax import lax
from jax.experimental import pallas as pl
from jax.experimental.pallas import tpu as pltpu


def _logits_from_tile(z_ref, w1_ref, b1_ref, w2_ref, b2_ref):
    """(N, T) f32 logits for the current batch tile, (features, batch) layout."""
    x = z_ref[...].astype(jnp.bfloat16)                                   # in-kernel cast
    h_pre = jnp.dot(w1_ref[...], x, preferred_element_type=jnp.float32) + b1_ref[...]
    hidden = jax.nn.sigmoid(h_pre)                                        # f32 (EUP)
    return jnp.dot(w2_ref[...], hidden, preferred_element_type=jnp.float32) + b2_ref[...]


def belief_update_single_tile_kernel(z_ref, w1_ref, b1_ref, w2_ref, b2_ref, out_ref):
    # Whole batch fits in VMEM: one pass, direct softmax over the lane (batch) axis.
    logits = _logits_from_tile(z_ref, w1_ref, b1_ref, w2_ref, b2_ref)     # (N, B) f32
    m = jnp.max(logits, axis=1, keepdims=True)
    e = jnp.exp(logits - m)
    denom = jnp.sum(e, axis=1, keepdims=True)
    out_ref[...] = (e * pl.reciprocal(denom, approx=True)).astype(out_ref.dtype)


def belief_update_tiled_kernel(z_ref, w1_ref, b1_ref, w2_ref, b2_ref, out_ref,
                               m_ref, l_ref, logits_ref,
                               *, valid_b, tile_b, num_tiles, keep_logits):
    # Two-sweep column softmax over the batch grid axis:
    #   phase 0: per-item running max / rescaled sum-exp (+ stash logits in VMEM scratch)
    #   phase 1: normalize (from the scratch, or recompute if keep_logits=False).
    phase = pl.program_id(0)
    k = pl.program_id(1)

    @pl.when(jnp.logical_and(phase == 0, k == 0))
    def _init():
        m_ref[...] = jnp.full_like(m_ref, -jnp.inf)
        l_ref[...] = jnp.zeros_like(l_ref)

    def _accumulate(lg):
        m_prev = m_ref[...]
        m_new = jnp.maximum(m_prev, jnp.max(lg, axis=1, keepdims=True))
        l_ref[...] = (l_ref[...] * jnp.exp(m_prev - m_new)
                      + jnp.sum(jnp.exp(lg - m_new), axis=1, keepdims=True))
        m_ref[...] = m_new

    @pl.when(phase == 0)
    def _stats():
        logits = _logits_from_tile(z_ref, w1_ref, b1_ref, w2_ref, b2_ref)  # (N, T) f32
        if keep_logits:
            col0 = pl.multiple_of(k * tile_b, tile_b)
            logits_ref[:, pl.ds(col0, tile_b)] = logits
        if valid_b is None:
            _accumulate(logits)
        else:
            # Padding columns exist only on the last tile; mask them there (and only for
            # the stats -- padded output columns are clipped by Pallas on writeback).
            is_last = k == num_tiles - 1

            @pl.when(jnp.logical_not(is_last))
            def _full():
                _accumulate(logits)

            @pl.when(is_last)
            def _masked():
                col = k * tile_b + lax.broadcasted_iota(jnp.int32, logits.shape, 1)
                _accumulate(jnp.where(col < valid_b, logits, -jnp.inf))

    @pl.when(phase == 1)
    def _normalize():
        if keep_logits:
            col0 = pl.multiple_of(k * tile_b, tile_b)
            logits = logits_ref[:, pl.ds(col0, tile_b)]
        else:
            logits = _logits_from_tile(z_ref, w1_ref, b1_ref, w2_ref, b2_ref)
        e = jnp.exp(logits - m_ref[...])
        out_ref[...] = (e * pl.reciprocal(l_ref[...], approx=True)).astype(out_ref.dtype)


def prepare_params(w1, b1, w2, b2):
    """One-time (per-model) parameter prep.  W1 is the bf16 MXU operand; the second matmul
    consumes the f32 hidden so W2/biases stay f32 (tiny)."""
    return dict(
        w1=jnp.asarray(w1).astype(jnp.bfloat16),          # (2N, 2N)
        b1=jnp.asarray(b1, jnp.float32).reshape(-1, 1),   # (2N, 1)
        w2=jnp.asarray(w2, jnp.float32),                  # (N, 2N)
        b2=jnp.asarray(b2, jnp.float32).reshape(-1, 1),   # (N, 1)
    )


def belief_update_forward(z_t, params, *, batch_tile=32768, force_tiled=False,
                          single_pass_vmem_budget=32 << 20,
                          max_logits_scratch_bytes=24 << 20):
    """z_t: (2*num_items, B) features-major (batch on lanes), any float dtype (cast happens
    in-kernel).  Returns (num_items, B) f32 = softmax(fc21(sigmoid(fc1(z))), dim=0).T"""
    two_n, b = z_t.shape
    n = two_n // 2
    w1, b1, w2, b2 = params["w1"], params["b1"], params["w2"], params["b2"]
    vmem = pl.BlockSpec(memory_space=pltpu.MemorySpace.VMEM)

    # --- single-pass path: whole batch resident in VMEM (minimum HBM traffic) ---
    z_itemsize = jnp.dtype(z_t.dtype).itemsize
    single_pass_bytes = b * (two_n * z_itemsize + two_n * 4 + 2 * n * 4)  # z + hidden + out/exp
    if not force_tiled and single_pass_bytes <= single_pass_vmem_budget:
        limit = int(min(48 << 20, max(16 << 20, 2 * single_pass_bytes)))
        return pl.pallas_call(
            belief_update_single_tile_kernel,
            out_shape=jax.ShapeDtypeStruct((n, b), jnp.float32),
            in_specs=[vmem] * 5,
            out_specs=vmem,
            compiler_params=pltpu.CompilerParams(vmem_limit_bytes=limit),
        )(z_t, w1, b1, w2, b2)

    # --- batch-tiled, pipelined two-sweep path ---
    assert batch_tile % 128 == 0, "batch_tile must be a multiple of the 128-lane width"
    tb = min(batch_tile, pl.cdiv(b, 128) * 128)
    num_tiles = pl.cdiv(b, tb)
    b_pad = num_tiles * tb
    valid_b = b if b_pad != b else None

    logits_scratch_bytes = n * b_pad * 4
    keep_logits = logits_scratch_bytes <= max_logits_scratch_bytes
    logits_scratch_shape = (n, b_pad) if keep_logits else (n, 128)  # tiny dummy when unused

    est_bytes = (2 * two_n * tb * z_itemsize        # double-buffered z tile
                 + 2 * n * tb * 4                   # double-buffered out tile
                 + (logits_scratch_bytes if keep_logits else 0)
                 + 4 * two_n * tb * 4)              # in-kernel temporaries (hidden/exp/...)
    vmem_limit = int(min(48 << 20, max(16 << 20, int(est_bytes * 1.5))))

    kernel = functools.partial(belief_update_tiled_kernel, valid_b=valid_b, tile_b=tb,
                               num_tiles=num_tiles, keep_logits=keep_logits)

    if keep_logits:
        z_index_map = lambda p, k: (0, k * (1 - p))   # z DMA'd only during the stats sweep
    else:
        z_index_map = lambda p, k: (0, k)             # recompute path streams z both sweeps

    return pl.pallas_call(
        kernel,
        out_shape=jax.ShapeDtypeStruct((n, b), jnp.float32),
        grid_spec=pltpu.PrefetchScalarGridSpec(
            num_scalar_prefetch=0,
            grid=(2, num_tiles),                                     # (softmax phase, batch tile)
            in_specs=[
                pl.BlockSpec((two_n, tb), z_index_map),              # z tile (streamed)
                pl.BlockSpec((two_n, two_n), lambda p, k: (0, 0)),   # W1 (resident, bf16)
                pl.BlockSpec((two_n, 1), lambda p, k: (0, 0)),       # b1
                pl.BlockSpec((n, two_n), lambda p, k: (0, 0)),       # W2
                pl.BlockSpec((n, 1), lambda p, k: (0, 0)),           # b2
            ],
            # Phase 0 never writes the output: pin its block so no garbage HBM writeback.
            out_specs=pl.BlockSpec((n, tb), lambda p, k: (0, k * p)),
            scratch_shapes=[
                pltpu.VMEM((n, 1), jnp.float32),                 # running per-item max
                pltpu.VMEM((n, 1), jnp.float32),                 # running per-item sum-exp
                pltpu.VMEM(logits_scratch_shape, jnp.float32),   # stashed logits (phase 1)
            ],
        ),
        # Both axes carry the softmax reduction state -> sequential ("arbitrary").
        compiler_params=pltpu.CompilerParams(
            dimension_semantics=("arbitrary", "arbitrary"),
            vmem_limit_bytes=vmem_limit),
    )(z_t, w1, b1, w2, b2)


def _torch_style_linear_init(key, out_features, in_features):
    # Deterministic stand-in for nn.Linear default init: U(-1/sqrt(fan_in), 1/sqrt(fan_in))
    bound = 1.0 / (in_features ** 0.5)
    kw, kb = jax.random.split(key)
    w = jax.random.uniform(kw, (out_features, in_features), jnp.float32, -bound, bound)
    b = jax.random.uniform(kb, (out_features,), jnp.float32, -bound, bound)
    return w, b


def _reference(z, w1, b1, w2, b2):
    """Pure-JAX reference of the PyTorch module, evaluated with the same bf16-rounded
    z / W1 operands the kernel consumes (f32 math, full-precision dots)."""
    z_bf = z.astype(jnp.bfloat16).astype(jnp.float32)
    w1_bf = w1.astype(jnp.bfloat16).astype(jnp.float32)
    hidden = jax.nn.sigmoid(jnp.dot(z_bf, w1_bf.T, precision=lax.Precision.HIGHEST) + b1)
    logits = jnp.dot(hidden, w2.T, precision=lax.Precision.HIGHEST) + b2
    return jax.nn.softmax(logits, axis=0)


if __name__ == "__main__":
    num_items = 8
    key = jax.random.PRNGKey(0)
    k_z1, k_z2, k1, k2 = jax.random.split(key, 4)

    w1, b1 = _torch_style_linear_init(k1, num_items * 2, num_items * 2)   # fc1
    w2, b2 = _torch_style_linear_init(k2, num_items, num_items * 2)       # fc21
    params = prepare_params(w1, b1, w2, b2)   # once per model, not per forward call

    # 1) Small batch: single-pass (whole batch resident in VMEM).
    batch = 8
    z = jax.random.normal(k_z1, (batch, num_items * 2), jnp.float32)      # PyTorch layout (B, 2N)
    out = belief_update_forward(z.T, params).T                            # back to (B, N)
    out = jax.block_until_ready(out)
    ref = _reference(z, w1, b1, w2, b2)
    assert out.shape == (batch, num_items)
    assert jnp.allclose(out, ref, atol=2e-3, rtol=2e-3), float(jnp.max(jnp.abs(out - ref)))

    # 2) Non-multiple-of-128 batch, forced onto the tiled path (logits-scratch variant).
    batch2 = 300
    z2 = jax.random.normal(k_z2, (batch2, num_items * 2), jnp.float32)
    out2 = belief_update_forward(z2.T, params, batch_tile=128, force_tiled=True).T
    out2 = jax.block_until_ready(out2)
    ref2 = _reference(z2, w1, b1, w2, b2)
    assert out2.shape == (batch2, num_items)
    assert jnp.allclose(out2, ref2, atol=2e-3, rtol=2e-3), float(jnp.max(jnp.abs(out2 - ref2)))

    # 3) Same shapes, tiled path with the recompute fallback (scratch budget = 0),
    #    covering the v7x low-VMEM configuration.
    out3 = belief_update_forward(z2.T, params, batch_tile=128, force_tiled=True,
                                 max_logits_scratch_bytes=0).T
    out3 = jax.block_until_ready(out3)
    assert jnp.allclose(out3, ref2, atol=2e-3, rtol=2e-3), float(jnp.max(jnp.abs(out3 - ref2)))

    print("KERNEL_OK")
</pallas_src>

<mosaic_0001>
module attributes {stable_mosaic.version = 11 : i64} {
  func.func @belief_update_single_tile_kernel(%arg0: memref<16x8xf32, #tpu.memory_space<vmem>>, %arg1: memref<16x16xbf16, #tpu.memory_space<vmem>>, %arg2: memref<16x1xf32, #tpu.memory_space<vmem>>, %arg3: memref<8x16xf32, #tpu.memory_space<vmem>>, %arg4: memref<8x1xf32, #tpu.memory_space<vmem>>, %arg5: memref<8x8xf32, #tpu.memory_space<vmem>>) attributes {dimension_semantics = [], scalar_prefetch = 0 : i64, scratch_operands = 0 : i64, tpu.core_type = #tpu.core_type<tc>} {
    %c0 = arith.constant 0 : index
    %c0_0 = arith.constant 0 : index
    %0 = vector.load %arg0[%c0, %c0_0] : memref<16x8xf32, #tpu.memory_space<vmem>>, vector<16x8xf32>
    %1 = arith.truncf %0 : vector<16x8xf32> to vector<16x8xbf16>
    %c0_1 = arith.constant 0 : index
    %c0_2 = arith.constant 0 : index
    %2 = vector.load %arg1[%c0_1, %c0_2] : memref<16x16xbf16, #tpu.memory_space<vmem>>, vector<16x16xbf16>
    %cst = arith.constant dense<0.000000e+00> : vector<16x8xf32>
    %3 = tpu.matmul %2, %1, %cst {dimension_numbers = #tpu.dot_dimension_numbers<[1], [0], [0], [1], [0, 0, 1, 1], [], []>} : vector<16x16xbf16>, vector<16x8xbf16>, vector<16x8xf32> -> vector<16x8xf32>
    %c0_3 = arith.constant 0 : index
    %c0_4 = arith.constant 0 : index
    %4 = vector.load %arg2[%c0_3, %c0_4] : memref<16x1xf32, #tpu.memory_space<vmem>>, vector<16x1xf32>
    %5 = vector.broadcast %4 : vector<16x1xf32> to vector<16x8xf32>
    %6 = arith.addf %3, %5 : vector<16x8xf32>
    %7 = arith.negf %6 : vector<16x8xf32>
    %8 = math.exp %7 : vector<16x8xf32>
    %cst_5 = arith.constant 1.000000e+00 : f32
    %9 = vector.broadcast %cst_5 : f32 to vector<16x8xf32>
    %10 = arith.addf %9, %8 : vector<16x8xf32>
    %11 = arith.divf %9, %10 : vector<16x8xf32>
    %c0_6 = arith.constant 0 : index
    %c0_7 = arith.constant 0 : index
    %12 = vector.load %arg3[%c0_6, %c0_7] : memref<8x16xf32, #tpu.memory_space<vmem>>, vector<8x16xf32>
    %cst_8 = arith.constant dense<0.000000e+00> : vector<8x8xf32>
    %13 = tpu.matmul %12, %11, %cst_8 {dimension_numbers = #tpu.dot_dimension_numbers<[1], [0], [0], [1], [0, 0, 1, 1], [], []>} : vector<8x16xf32>, vector<16x8xf32>, vector<8x8xf32> -> vector<8x8xf32>
    %c0_9 = arith.constant 0 : index
    %c0_10 = arith.constant 0 : index
    %14 = vector.load %arg4[%c0_9, %c0_10] : memref<8x1xf32, #tpu.memory_space<vmem>>, vector<8x1xf32>
    %15 = vector.broadcast %14 : vector<8x1xf32> to vector<8x8xf32>
    %16 = arith.addf %13, %15 : vector<8x8xf32>
    %cst_11 = arith.constant dense<0xFF800000> : vector<8xf32>
    %17 = vector.multi_reduction <maximumf>, %16, %cst_11 [1] : vector<8x8xf32> to vector<8xf32>
    %18 = vector.shape_cast %17 : vector<8xf32> to vector<8x1xf32>
    %19 = vector.broadcast %18 : vector<8x1xf32> to vector<8x8xf32>
    %20 = arith.subf %16, %19 : vector<8x8xf32>
    %21 = math.exp %20 : vector<8x8xf32>
    %cst_12 = arith.constant dense<0.000000e+00> : vector<8xf32>
    %22 = vector.multi_reduction <add>, %21, %cst_12 [1] : vector<8x8xf32> to vector<8xf32>
    %23 = vector.shape_cast %22 : vector<8xf32> to vector<8x1xf32>
    %24 = tpu.reciprocal %23 {approx = true} : vector<8x1xf32> -> vector<8x1xf32>
    %25 = vector.broadcast %24 : vector<8x1xf32> to vector<8x8xf32>
    %26 = arith.mulf %21, %25 : vector<8x8xf32>
    %c0_13 = arith.constant 0 : index
    %c0_14 = arith.constant 0 : index
    %27 = vector.load %arg5[%c0_13, %c0_14] : memref<8x8xf32, #tpu.memory_space<vmem>>, vector<8x8xf32>
    tpu.vector_store %arg5[%c0_13, %c0_14], %26 {strides = array<i32>} : memref<8x8xf32, #tpu.memory_space<vmem>>, vector<8x8xf32>,
    return
  }
}

</mosaic_0001>

<llo_original>
// kernel: tpu_custom_call.1
$region0: #{tpu_custom_call.1}
  #allocation0 [shape = 'u32[]', space=smem, size = 0x4, offset = 0x4, fixed_abs, tag = 'smem constant byte address 0x4 - core index']
  #allocation1 [shape = 'u32[144,128]{1,0:T(1,128)}', space=vmem, size = 0x12000, scoped, tag = 'internal scratch']
  %s0 = inlined_call_operand.vmem [shape: f32[16,8], index: 0, kind: input, shape index: {}]
  %s1 = inlined_call_operand.vmem [shape: bf16[16,16], index: 1, kind: input, shape index: {}]
  %s2 = inlined_call_operand.vmem [shape: f32[16,1], index: 2, kind: input, shape index: {}]
  %s3 = inlined_call_operand.vmem [shape: f32[8,16], index: 3, kind: input, shape index: {}]
  %s4 = inlined_call_operand.vmem [shape: f32[8,1], index: 4, kind: input, shape index: {}]
  %s5 = inlined_call_operand.hbm [shape: f32[8,8], index: 5, kind: output, shape index: {}]
  %s6 = sld [smem:[#allocation0]]
  $region30: #{tpu_custom_call.1} parent=0
    _
  %s8 = ssub.s32 1, %s6
  %s9 = scalar_select 0, %s8, %s6
  $region1: #{tpu_custom_call.1} parent=0
    #allocation2 [shape = 'u8[4096]{0}', space=vmem, size = 0x1000, scoped, tag = 'output window, operand 0, single buffered']
    #allocation3 [shape = 's32[1]{0}', space=sflag, size = 0x4, scoped, tag = 'scoped memory for tpu_custom_call.1']
    %10 = vsyncpa [#allocation3], 0
    // Predicated region
    $region2: #{tpu_custom_call.1} parent=1 // pred_check
      _
    $region3: #{tpu_custom_call.1} parent=1 // pred_check_branch
      %12 = sbr.rel (0) target = $region5
    $region4: #{tpu_custom_call.1} parent=1 // pred_region
      _
    $region5: #{tpu_custom_call.1} parent=1 // pred_fallthru
      _
    // Predicated region
    $region6: #{tpu_custom_call.1} parent=1 // pred_check
      _
    $region7: #{tpu_custom_call.1} parent=1 // pred_check_branch
      %14 = sbr.rel (0) target = $region9
    $region8: #{tpu_custom_call.1} parent=1 // pred_region
      _
    $region9: #{tpu_custom_call.1} parent=1 // pred_fallthru
      _
    // Predicated region
    $region10: #{tpu_custom_call.1} parent=1 // pred_check
      _
    $region11: #{tpu_custom_call.1} parent=1 // pred_check_branch
      %16 = sbr.rel (0) target = $region13
    $region12: #{tpu_custom_call.1} parent=1 // pred_region
      _
    $region13: #{tpu_custom_call.1} parent=1 // pred_fallthru
      _
    // Predicated region
    $region14: #{tpu_custom_call.1} parent=1 // pred_check
      _
    $region15: #{tpu_custom_call.1} parent=1 // pred_check_branch
      %18 = sbr.rel (0) target = $region17
    $region16: #{tpu_custom_call.1} parent=1 // pred_region
      _
    $region17: #{tpu_custom_call.1} parent=1 // pred_fallthru
      _
    // Predicated region
    $region18: #{tpu_custom_call.1} parent=1 // pred_check
      _
    $region19: #{tpu_custom_call.1} parent=1 // pred_check_branch
      %20 = sbr.rel (0) target = $region21
    $region20: #{tpu_custom_call.1} parent=1 // pred_region
      _
    $region21: #{tpu_custom_call.1} parent=1 // pred_fallthru
      _
    %v22 = vld [vmem:[%s0] sm:$0xff]
    %v23 = vld [vmem:[%s0 + $0x8] sm:$0xff]
    %v24 = vpack.c.bf16 %v23, %v22
    %v25 = vld [vmem:[%s1] sm:$0xf]
    %v26 = vld [vmem:[%s1 + $0x4] sm:$0xf]
    %v27 = vld [vmem:[%s2] sm:$0xff]
    %v28 = vld [vmem:[%s2 + $0x8] sm:$0xff]
    %30 = vset.pattern.permute.xlu0 0
    %31 = vperm.xlu0 %30, %v27
    %v32 = vpop.permute.xlu0 %31
    %35 = vset.pattern.permute.xlu0 0
    %36 = vperm.xlu0 %35, %v28
    %v37 = vpop.permute.xlu0 %36
    %v41 = vunpack.c.l.b16 %v25
    %v42 = vunpack.c.l.b16 %v26
    %v43 = vpack.c.b16 %v42, %v41
    %vm44 = vcmask 130048
    %v46 = vsel %vm44, %v43, 0
    %48 = vmatprep.subr.bf16.mxu0 0
    %49 = vmatpush1.bf16.msra.mxu0 %v24
    %50 = vmatprep.subr.bf16.mxu0 0
    %51 = vmatpush1.bf16.msra.mxu0 0
    %52 = vmatprep.subr.bf16.mxu0 0
    %53 = vmatpush1.bf16.msra.mxu0 0
    %54 = vmatprep.subr.bf16.mxu0 0
    %55 = vmatpush1.bf16.msra.mxu0 0
    %56 = vmatprep.subr.bf16.mxu0 0
    %57 = vmatpush1.bf16.msra.mxu0 0
    %58 = vmatprep.subr.bf16.mxu0 0
    %59 = vmatpush1.bf16.msra.mxu0 0
    %60 = vmatprep.subr.bf16.mxu0 0
    %61 = vmatpush1.bf16.msra.mxu0 0
    %62 = vmatprep.subr.bf16.mxu0 0
    %63 = vmatpush1.bf16.msra.mxu0 0
    %64 = vmatprep.subr.bf16.mxu0 0
    %65 = vmatpush1.bf16.msra.mxu0 0
    %66 = vmatprep.subr.bf16.mxu0 0
    %67 = vmatpush1.bf16.msra.mxu0 0
    %68 = vmatprep.subr.bf16.mxu0 0
    %69 = vmatpush1.bf16.msra.mxu0 0
    %70 = vmatprep.subr.bf16.mxu0 0
    %71 = vmatpush1.bf16.msra.mxu0 0
    %72 = vmatprep.subr.bf16.mxu0 0
    %73 = vmatpush1.bf16.msra.mxu0 0
    %74 = vmatprep.subr.bf16.mxu0 0
    %75 = vmatpush1.bf16.msra.mxu0 0
    %76 = vmatprep.subr.bf16.mxu0 0
    %77 = vmatpush1.bf16.msra.mxu0 0
    %78 = vmatprep.subr.bf16.mxu0 0
    %79 = vmatpush1.bf16.msra.mxu0 0
    %80 = vmatprep.mubr.bf16.mxu0 0
    %81 = vmatmul.mubr.bf16.gmra.mrb[0].mxu0 %v46
    %v82 = vpop.f32.mrb[0].mxu0
    %v83 = vadd.f32 %v32, %v82
    %v84 = vpop.f32.mrb[0].mxu0
    %v85 = vpop.f32.mrb[0].mxu0
    %v86 = vadd.f32 %v37, %v85
    %v87 = vpop.f32.mrb[0].mxu0
    %88 = vdwg.mxu0
    %v89 = vxor.u32 %v83, 2147483648
    %v90 = vxor.u32 %v86, 2147483648
    %v91 = vmul.f32 %v89, 1.442695
    %v92 = vpow.pop %v91
    %v93 = vmul.f32 %v90, 1.442695
    %v94 = vpow.pop %v93
    %v95 = vadd.f32 %v92, 1.0
    %v96 = vadd.f32 %v94, 1.0
    %v97 = vrcp.pop %v95
    %v98 = vmul.f32 1.0, %v97
    %v99 = vrcp.pop %v96
    %v100 = vmul.f32 1.0, %v99
    %v101 = vld [vmem:[%s3] sm:$0xff]
    %v102 = vld [vmem:[%s4] sm:$0xff]
    %104 = vset.pattern.permute.xlu0 0
    %105 = vperm.xlu0 %104, %v102
    %v106 = vpop.permute.xlu0 %105
    %v109 = vsel %vm44, %v101, 0
    %111 = vmatprep.subr.mxu0 0.0
    %112 = vmatpush1.msra.mxu0 %v98
    %113 = vmatprep.subr.mxu0 0.0
    %114 = vmatpush1.msra.mxu0 %v100
    %115 = vmatprep.subr.mxu0 0.0
    %116 = vmatpush1.msra.mxu0 0.0
    %117 = vmatprep.subr.mxu0 0.0
    %118 = vmatpush1.msra.mxu0 0.0
    %119 = vmatprep.subr.mxu0 0.0
    %120 = vmatpush1.msra.mxu0 0.0
    %121 = vmatprep.subr.mxu0 0.0
    %122 = vmatpush1.msra.mxu0 0.0
    %123 = vmatprep.subr.mxu0 0.0
    %124 = vmatpush1.msra.mxu0 0.0
    %125 = vmatprep.subr.mxu0 0.0
    %126 = vmatpush1.msra.mxu0 0.0
    %127 = vmatprep.subr.mxu0 0.0
    %128 = vmatpush1.msra.mxu0 0.0
    %129 = vmatprep.subr.mxu0 0.0
    %130 = vmatpush1.msra.mxu0 0.0
    %131 = vmatprep.subr.mxu0 0.0
    %132 = vmatpush1.msra.mxu0 0.0
    %133 = vmatprep.subr.mxu0 0.0
    %134 = vmatpush1.msra.mxu0 0.0
    %135 = vmatprep.subr.mxu0 0.0
    %136 = vmatpush1.msra.mxu0 0.0
    %137 = vmatprep.subr.mxu0 0.0
    %138 = vmatpush1.msra.mxu0 0.0
    %139 = vmatprep.subr.mxu0 0.0
    %140 = vmatpush1.msra.mxu0 0.0
    %141 = vmatprep.subr.mxu0 0.0
    %142 = vmatpush1.msra.mxu0 0.0
    %143 = vmatprep.subr.mxu0 0.0
    %144 = vmatpush1.msra.mxu0 0.0
    %145 = vmatprep.subr.mxu0 0.0
    %146 = vmatpush1.msra.mxu0 0.0
    %147 = vmatprep.subr.mxu0 0.0
    %148 = vmatpush1.msra.mxu0 0.0
    %149 = vmatprep.subr.mxu0 0.0
    %150 = vmatpush1.msra.mxu0 0.0
    %151 = vmatprep.subr.mxu0 0.0
    %152 = vmatpush1.msra.mxu0 0.0
    %153 = vmatprep.subr.mxu0 0.0
    %154 = vmatpush1.msra.mxu0 0.0
    %155 = vmatprep.subr.mxu0 0.0
    %156 = vmatpush1.msra.mxu0 0.0
    %157 = vmatprep.subr.mxu0 0.0
    %158 = vmatpush1.msra.mxu0 0.0
    %159 = vmatprep.subr.mxu0 0.0
    %160 = vmatpush1.msra.mxu0 0.0
    %161 = vmatprep.subr.mxu0 0.0
    %162 = vmatpush1.msra.mxu0 0.0
    %163 = vmatprep.subr.mxu0 0.0
    %164 = vmatpush1.msra.mxu0 0.0
    %165 = vmatprep.subr.mxu0 0.0
    %166 = vmatpush1.msra.mxu0 0.0
    %167 = vmatprep.subr.mxu0 0.0
    %168 = vmatpush1.msra.mxu0 0.0
    %169 = vmatprep.subr.mxu0 0.0
    %170 = vmatpush1.msra.mxu0 0.0
    %171 = vmatprep.subr.mxu0 0.0
    %172 = vmatpush1.msra.mxu0 0.0
    %173 = vmatprep.subr.mxu0 0.0
    %174 = vmatpush1.msra.mxu0 0.0
    %175 = vmatprep.mubr.f32.mxu0 0.0
    %176 = vmatmul.mubr.f32.gmra.mrb[0].mxu0 %v109
    %v177 = vpop.f32.mrb[0].mxu0
    %v178 = vadd.f32 %v106, %v177
    %v179 = vpop.f32.mrb[0].mxu0
    %180 = vdwg.mxu0
    %vm181 = vcmask 64512
    %v182 = vsel %vm181, %v178, -inf
    %183 = vmax.xlane.f32.xlu0 %v182
    %v184 = vpop.xlane.xlu0 %183
    %v185 = vsub.f32 %v178, %v184
    %v186 = vmul.f32 %v185, 1.442695
    %v187 = vpow.pop %v186
    %v188 = vsel %vm181, %v187, 0.0
    %189 = vadd.xlane.f32.xlu0 %v188
    %v190 = vpop.xlane.xlu0 %189
    %v191 = vrcp.pop %v190
    %v192 = vmul.f32 %v187, %v191
    %193 = vst.msk [vmem:[#allocation2] sm:$0xff] %vm181, %v192
    // Predicated region
    $region22: #{tpu_custom_call.1} parent=1 // pred_check
      _
    $region23: #{tpu_custom_call.1} parent=1 // pred_check_branch
      %195 = sbr.rel (0) target = $region25
    $region24: #{tpu_custom_call.1} parent=1 // pred_region
      %s197 = ssub.s32 128, 128
      %198 = vsyncadd [#allocation3], %s197
      %s200 = sshll.u32 [#allocation2], 4
      %s201 = int_to_ptr.vmem [resolvable:$true] %s200
      %203 = dma.vmem_to_hbm [thread:$0]  %s201, 128, %s5, [#allocation3]
    $region25: #{tpu_custom_call.1} parent=1 // pred_fallthru
      _
    // Predicated region
    $region26: #{tpu_custom_call.1} parent=1 // pred_check
      _
    $region27: #{tpu_custom_call.1} parent=1 // pred_check_branch
      %205 = sbr.rel (0) target = $region29
    $region28: #{tpu_custom_call.1} parent=1 // pred_region
      %206 = dma.done [#allocation3], 128
    $region29: #{tpu_custom_call.1} parent=1 // pred_fallthru
      _
    %207 = vsyncpa [#allocation3], 1

</llo_original>
